<compile_context>
chip_gen: v6e
topology: v6e:2x2x1
jax: 0.10.0
libtpu: 0.0.40
codegen_flags: <defaults>
</compile_context>

<pallas_src>
import jax
import jax.numpy as jnp
from jax import lax
from jax.experimental import pallas as pl
from jax.experimental.pallas import tpu as pltpu


_FAST_PATH_MAX_ELEMS = 256 * 1024        # <= ~1 MiB per f32 input: single block wins
_TM_MAX = 256                            # sublane tile (rows)
_F32_TILE_BUDGET = 4 * 1024 * 1024       # f32 bytes of per-block working data
_VMEM_LIMIT_BYTES = 64 * 1024 * 1024     # <= v7x physical VMEM; ample on v5e/v6e


def _round_up(x, m):
    return ((x + m - 1) // m) * m


# --------------------------------------------------------------------------- #
# Fast path: whole problem as one VMEM block, scalar result in SMEM.
# --------------------------------------------------------------------------- #
def _smape_single_block_kernel(f_ref, y_ref, m_ref, out_ref):
    f = f_ref[...].astype(jnp.float32)
    y = y_ref[...].astype(jnp.float32)
    m = m_ref[...].astype(jnp.float32)

    num = jnp.abs(f - y) * m
    den = jnp.abs(f) + jnp.abs(y)
    # divide_no_nan: den == 0 implies num == 0, so a guarded divide is exact.
    r = jnp.where(den > 0.0, num / den, 0.0)

    out_ref[0, 0] = 200.0 * jnp.sum(r) / float(f.size)


# --------------------------------------------------------------------------- #
# Tiled path: grid over (row tiles, col tiles); each tile owns an (8,128) block.
# --------------------------------------------------------------------------- #
def _make_tiled_kernel(B, T, TM, TN):
    # TM is a multiple of 8, TN a multiple of 128 (rounded up in _choose_tiles).
    need_row_mask = (B % TM) != 0
    need_col_mask = (T % TN) != 0

    def kernel(f_ref, y_ref, m_ref, out_ref):
        f = f_ref[...]
        y = y_ref[...]
        m = m_ref[...]
        if f.dtype != jnp.float32:
            f = f.astype(jnp.float32)
        if y.dtype != jnp.float32:
            y = y.astype(jnp.float32)
        if m.dtype != jnp.float32:
            m = m.astype(jnp.float32)

        num = jnp.abs(f - y) * m
        den = jnp.abs(f) + jnp.abs(y)
        r = jnp.where(den > 0.0, num / den, 0.0)

        # Zero padded lanes of edge tiles with broadcastable 1-D iota masks.
        # (Applied AFTER r so garbage/NaN in padded lanes never propagates.)
        if need_row_mask or need_col_mask:
            valid = None
            if need_row_mask:
                i = pl.program_id(0)
                rows = lax.broadcasted_iota(jnp.int32, (TM, 1), 0)
                valid = rows < (B - i * TM)
            if need_col_mask:
                j = pl.program_id(1)
                cols = lax.broadcasted_iota(jnp.int32, (1, TN), 1)
                cvalid = cols < (T - j * TN)
                valid = cvalid if valid is None else (valid & cvalid)
            r = jnp.where(valid, r, 0.0)

        # Layout-preserving fold to a single (8, 128) vreg of partial sums:
        #   1) split the row dim on sublane-tile boundaries and VPU-add them,
        #   2) fold lane tiles with statically aligned 128-wide slices.
        folded = jnp.sum(r.reshape(TM // 8, 8, TN), axis=0)          # (8, TN)
        part = folded[:, 0:128]
        for c in range(1, TN // 128):
            part = part + folded[:, c * 128:(c + 1) * 128]           # (8, 128)

        out_ref[...] = part

    return kernel


def _choose_tiles(B, T, itemsize):
    """Lane/sublane-aligned tiles; larger element budget for sub-4-byte inputs."""
    TM = min(_round_up(B, 8), _TM_MAX)
    budget = _F32_TILE_BUDGET if itemsize >= 4 else (_F32_TILE_BUDGET * 3) // 2
    tn_cap = max(128, ((budget // (4 * TM)) // 128) * 128)
    TN = min(_round_up(T, 128), tn_cap)
    return TM, TN


def smape_loss(insample, freq, forecast, target, mask):
    """Pallas implementation of smape_loss.forward.

    insample / freq are accepted for signature parity with the PyTorch module but
    (as in the reference) are unused by the computation. Returns a float32 scalar:
    200 * mean(divide_no_nan(|f - y|, |f| + |y|) * mask).
    """
    del insample, freq  # unused in the reference forward
    assert forecast.shape == target.shape == mask.shape
    assert forecast.ndim == 2, "expected (batch, time) inputs"
    B, T = forecast.shape

    if B * T <= _FAST_PATH_MAX_ELEMS:
        out = pl.pallas_call(
            _smape_single_block_kernel,
            out_shape=jax.ShapeDtypeStruct((1, 1), jnp.float32),
            in_specs=[
                pl.BlockSpec((B, T), lambda: (0, 0)),
                pl.BlockSpec((B, T), lambda: (0, 0)),
                pl.BlockSpec((B, T), lambda: (0, 0)),
            ],
            out_specs=pl.BlockSpec(memory_space=pltpu.SMEM),
        )(forecast, target, mask)
        return out[0, 0]

    TM, TN = _choose_tiles(B, T, forecast.dtype.itemsize)
    g0 = pl.cdiv(B, TM)
    g1 = pl.cdiv(T, TN)

    in_bytes = sum(x.size * x.dtype.itemsize for x in (forecast, target, mask))
    out_bytes = g0 * 8 * g1 * 128 * 4

    partials = pl.pallas_call(
        _make_tiled_kernel(B, T, TM, TN),
        out_shape=jax.ShapeDtypeStruct((g0 * 8, g1 * 128), jnp.float32),
        grid=(g0, g1),
        in_specs=[
            pl.BlockSpec((TM, TN), lambda i, j: (i, j)),
            pl.BlockSpec((TM, TN), lambda i, j: (i, j)),
            pl.BlockSpec((TM, TN), lambda i, j: (i, j)),
        ],
        # Each (i, j) tile owns its partial block -> both axes megacore-parallel.
        out_specs=pl.BlockSpec((8, 128), lambda i, j: (i, j)),
        compiler_params=pltpu.CompilerParams(
            dimension_semantics=("parallel", "parallel"),
            vmem_limit_bytes=_VMEM_LIMIT_BYTES,
        ),
        cost_estimate=pl.CostEstimate(
            flops=8 * B * T,
            transcendentals=0,
            bytes_accessed=in_bytes + out_bytes,
        ),
    )(forecast, target, mask)

    total = jnp.sum(partials, dtype=jnp.float32)
    return (200.0 * total / float(B * T)).astype(jnp.float32)


def _smape_ref(forecast, target, mask):
    f = forecast.astype(jnp.float32)
    y = target.astype(jnp.float32)
    m = mask.astype(jnp.float32)
    r = jnp.abs(f - y) / (jnp.abs(f) + jnp.abs(y))
    r = jnp.where(jnp.isnan(r) | (r == jnp.inf), 0.0, r)
    return 200.0 * jnp.mean(r * m)


if __name__ == "__main__":
    key = jax.random.PRNGKey(0)
    k1, k2, k3, k4 = jax.random.split(key, 4)

    # --- 1) small shape: fast path (single block) --------------------------
    B, T = 4, 128          # batch, time
    IN_T, freq = 64, 12    # insample length / freq (unused by forward)
    insample = jax.random.normal(k1, (B, IN_T), dtype=jnp.float32)
    forecast = jax.random.normal(k2, (B, T), dtype=jnp.float32)
    target = jax.random.normal(k3, (B, T), dtype=jnp.float32)
    mask = (jax.random.uniform(k4, (B, T)) > 0.3).astype(jnp.float32)
    # exercise the divide_no_nan path: both forecast and target zero at a spot
    forecast = forecast.at[0, :8].set(0.0)
    target = target.at[0, :8].set(0.0)

    loss = jax.block_until_ready(smape_loss(insample, freq, forecast, target, mask))
    ref = _smape_ref(forecast, target, mask)
    assert jnp.allclose(loss, ref, rtol=1e-4, atol=1e-5), (loss, ref)

    # --- 2) larger shape: tiled path with row & column edge tiles ----------
    k5, k6, k7 = jax.random.split(k1, 3)
    B2, T2 = 300, 5000     # grid = (2, 2); both edge masks exercised
    forecast2 = jax.random.normal(k5, (B2, T2), dtype=jnp.float32)
    target2 = jax.random.normal(k6, (B2, T2), dtype=jnp.float32)
    mask2 = (jax.random.uniform(k7, (B2, T2)) > 0.3).astype(jnp.float32)
    forecast2 = forecast2.at[0, :16].set(0.0)
    target2 = target2.at[0, :16].set(0.0)

    loss2 = jax.block_until_ready(
        smape_loss(insample, freq, forecast2, target2, mask2))
    ref2 = _smape_ref(forecast2, target2, mask2)
    assert jnp.allclose(loss2, ref2, rtol=1e-4, atol=1e-5), (loss2, ref2)

    # --- 3) bf16 inputs: half the HBM traffic, cast in-kernel --------------
    k8, k9, k10 = jax.random.split(k2, 3)
    B3, T3 = 44, 8000      # rounded-up (48, 8064) single tile; both masks active
    forecast3 = jax.random.normal(k8, (B3, T3), dtype=jnp.bfloat16)
    target3 = jax.random.normal(k9, (B3, T3), dtype=jnp.bfloat16)
    mask3 = (jax.random.uniform(k10, (B3, T3)) > 0.3).astype(jnp.bfloat16)

    loss3 = jax.block_until_ready(
        smape_loss(insample, freq, forecast3, target3, mask3))
    ref3 = _smape_ref(forecast3, target3, mask3)
    assert jnp.allclose(loss3, ref3, rtol=1e-3, atol=1e-4), (loss3, ref3)

    print("KERNEL_OK")
</pallas_src>

<mosaic_0001>
module attributes {stable_mosaic.version = 11 : i64} {
  func.func @_smape_single_block_kernel(%arg0: memref<4x128xf32, #tpu.memory_space<vmem>>, %arg1: memref<4x128xf32, #tpu.memory_space<vmem>>, %arg2: memref<4x128xf32, #tpu.memory_space<vmem>>, %arg3: memref<1x1xf32, #tpu.memory_space<smem>>) attributes {dimension_semantics = [], scalar_prefetch = 0 : i64, scratch_operands = 0 : i64, tpu.core_type = #tpu.core_type<tc>} {
    %c0 = arith.constant 0 : index
    %c0_0 = arith.constant 0 : index
    %0 = vector.load %arg0[%c0, %c0_0] : memref<4x128xf32, #tpu.memory_space<vmem>>, vector<4x128xf32>
    %c0_1 = arith.constant 0 : index
    %c0_2 = arith.constant 0 : index
    %1 = vector.load %arg1[%c0_1, %c0_2] : memref<4x128xf32, #tpu.memory_space<vmem>>, vector<4x128xf32>
    %c0_3 = arith.constant 0 : index
    %c0_4 = arith.constant 0 : index
    %2 = vector.load %arg2[%c0_3, %c0_4] : memref<4x128xf32, #tpu.memory_space<vmem>>, vector<4x128xf32>
    %3 = arith.subf %0, %1 : vector<4x128xf32>
    %4 = math.absf %3 : vector<4x128xf32>
    %5 = arith.mulf %4, %2 : vector<4x128xf32>
    %6 = math.absf %0 : vector<4x128xf32>
    %7 = math.absf %1 : vector<4x128xf32>
    %8 = arith.addf %6, %7 : vector<4x128xf32>
    %cst = arith.constant 0.000000e+00 : f32
    %9 = vector.broadcast %cst : f32 to vector<4x128xf32>
    %10 = arith.cmpf ogt, %8, %9 : vector<4x128xf32>
    %11 = arith.divf %5, %8 : vector<4x128xf32>
    %cst_5 = arith.constant 0.000000e+00 : f32
    %12 = vector.broadcast %cst_5 : f32 to vector<4x128xf32>
    %13 = arith.select %10, %11, %12 : vector<4x128xi1>, vector<4x128xf32>
    %14 = vector.shape_cast %13 : vector<4x128xf32> to vector<1x4x128xf32>
    %cst_6 = arith.constant dense<0.000000e+00> : vector<1xf32>
    %15 = vector.multi_reduction <add>, %14, %cst_6 [1, 2] : vector<1x4x128xf32> to vector<1xf32>
    %16 = vector.shape_cast %15 : vector<1xf32> to vector<1x1x1xf32>
    %17 = vector.extract %16[0, 0, 0] : f32 from vector<1x1x1xf32>
    %cst_7 = arith.constant 2.000000e+02 : f32
    %18 = arith.mulf %cst_7, %17 : f32
    %cst_8 = arith.constant 5.120000e+02 : f32
    %19 = arith.divf %18, %cst_8 : f32
    %c0_9 = arith.constant 0 : index
    %c0_10 = arith.constant 0 : index
    %20 = memref.load %arg3[%c0_9, %c0_10] : memref<1x1xf32, #tpu.memory_space<smem>>
    memref.store %19, %arg3[%c0_9, %c0_10] : memref<1x1xf32, #tpu.memory_space<smem>>
    return
  }
}

</mosaic_0001>

<llo_original>
// kernel: tpu_custom_call.1
$region0: #{tpu_custom_call.1}
  #allocation0 [shape = 'u32[]', space=smem, size = 0x4, offset = 0x4, fixed_abs, tag = 'smem constant byte address 0x4 - core index']
  #allocation1 [shape = 'u32[144,128]{1,0:T(1,128)}', space=vmem, size = 0x12000, scoped, tag = 'internal scratch']
  %s0 = inlined_call_operand.hbm [shape: f32[4,128], index: 0, kind: input, shape index: {}]
  %s1 = inlined_call_operand.hbm [shape: f32[4,128], index: 1, kind: input, shape index: {}]
  %s2 = inlined_call_operand.hbm [shape: f32[4,128], index: 2, kind: input, shape index: {}]
  %s3 = inlined_call_operand.hbm [shape: f32[1,1], index: 3, kind: output, shape index: {}]
  %s4 = sld [smem:[#allocation0]]
  $region34: #{tpu_custom_call.1} parent=0
    _
  %s6 = ssub.s32 1, %s4
  %s7 = scalar_select 0, %s6, %s4
  $region1: #{tpu_custom_call.1} parent=0
    #allocation2 [shape = 'u8[2048]{0}', space=vmem, size = 0x800, scoped, tag = 'input window, operand 0, single buffered']
    #allocation3 [shape = 's32[1]{0}', space=sflag, size = 0x4, scoped, tag = 'scoped memory for tpu_custom_call.1']
    #allocation4 [shape = 's32[1]{0}', space=sflag, size = 0x4, scoped, tag = 'scoped memory for tpu_custom_call.1']
    #allocation5 [shape = 'u8[2048]{0}', space=vmem, size = 0x800, scoped, tag = 'input window, operand 1, single buffered']
    #allocation6 [shape = 's32[1]{0}', space=sflag, size = 0x4, scoped, tag = 'scoped memory for tpu_custom_call.1']
    #allocation7 [shape = 'u8[2048]{0}', space=vmem, size = 0x800, scoped, tag = 'input window, operand 2, single buffered']
    #allocation8 [shape = 'u8[512]{0}', space=smem, size = 0x200, scoped, tag = 'output window, operand 0, single buffered']
    %8 = vsyncpa [#allocation3], 0
    %9 = vsyncpa [#allocation6], 0
    %10 = vsyncpa [#allocation4], 0
    // Predicated region
    $region2: #{tpu_custom_call.1} parent=1 // pred_check
      _
    $region3: #{tpu_custom_call.1} parent=1 // pred_check_branch
      %12 = sbr.rel (0) target = $region5
    $region4: #{tpu_custom_call.1} parent=1 // pred_region
      %s14 = ssub.s32 64, 64
      %15 = vsyncadd [#allocation3], %s14
      %s17 = sshll.u32 [#allocation2], 4
      %s18 = int_to_ptr.vmem [resolvable:$true] %s17
      %20 = dma.hbm_to_vmem [thread:$0]  %s0, 64, %s18, [#allocation3]
    $region5: #{tpu_custom_call.1} parent=1 // pred_fallthru
      _
    // Predicated region
    $region6: #{tpu_custom_call.1} parent=1 // pred_check
      _
    $region7: #{tpu_custom_call.1} parent=1 // pred_check_branch
      %22 = sbr.rel (0) target = $region9
    $region8: #{tpu_custom_call.1} parent=1 // pred_region
      %s24 = ssub.s32 64, 64
      %25 = vsyncadd [#allocation6], %s24
      %s27 = sshll.u32 [#allocation5], 4
      %s28 = int_to_ptr.vmem [resolvable:$true] %s27
      %30 = dma.hbm_to_vmem [thread:$0]  %s1, 64, %s28, [#allocation6]
    $region9: #{tpu_custom_call.1} parent=1 // pred_fallthru
      _
    // Predicated region
    $region10: #{tpu_custom_call.1} parent=1 // pred_check
      _
    $region11: #{tpu_custom_call.1} parent=1 // pred_check_branch
      %32 = sbr.rel (0) target = $region13
    $region12: #{tpu_custom_call.1} parent=1 // pred_region
      %s34 = ssub.s32 64, 64
      %35 = vsyncadd [#allocation6], %s34
      %s37 = sshll.u32 [#allocation7], 4
      %s38 = int_to_ptr.vmem [resolvable:$true] %s37
      %40 = dma.hbm_to_vmem [thread:$0]  %s2, 64, %s38, [#allocation6]
    $region13: #{tpu_custom_call.1} parent=1 // pred_fallthru
      _
    // Predicated region
    $region14: #{tpu_custom_call.1} parent=1 // pred_check
      _
    $region15: #{tpu_custom_call.1} parent=1 // pred_check_branch
      %42 = sbr.rel (0) target = $region17
    $region16: #{tpu_custom_call.1} parent=1 // pred_region
      %43 = dma.done [#allocation3], 64
    $region17: #{tpu_custom_call.1} parent=1 // pred_fallthru
      _
    // Predicated region
    $region18: #{tpu_custom_call.1} parent=1 // pred_check
      _
    $region19: #{tpu_custom_call.1} parent=1 // pred_check_branch
      %45 = sbr.rel (0) target = $region21
    $region20: #{tpu_custom_call.1} parent=1 // pred_region
      %46 = dma.done [#allocation6], 64
    $region21: #{tpu_custom_call.1} parent=1 // pred_fallthru
      _
    // Predicated region
    $region22: #{tpu_custom_call.1} parent=1 // pred_check
      _
    $region23: #{tpu_custom_call.1} parent=1 // pred_check_branch
      %48 = sbr.rel (0) target = $region25
    $region24: #{tpu_custom_call.1} parent=1 // pred_region
      %49 = dma.done [#allocation6], 64
    $region25: #{tpu_custom_call.1} parent=1 // pred_fallthru
      _
    %v50 = vld [vmem:[#allocation2] sm:$0xf]
    %v51 = vld [vmem:[#allocation5] sm:$0xf]
    %v52 = vld [vmem:[#allocation7] sm:$0xf]
    %v53 = vsub.f32 %v50, %v51
    %v54 = vand.u32 2147483647, %v53
    %v55 = vmul.f32 %v54, %v52
    %v56 = vand.u32 2147483647, %v50
    %v57 = vand.u32 2147483647, %v51
    %v58 = vadd.f32 %v56, %v57
    %vm59 = vcmp.gt.f32.partialorder %v58, 0.0
    %v60 = vrcp.pop %v58
    %v61 = vmul.f32 %v55, %v60
    %v62 = vsel %vm59, %v61, 0.0
    %vm63 = vcmask 1043456
    %v64 = vsel %vm63, %v62, 0.0
    %65 = vadd.xlane.f32.xlu0 %v64
    %v66 = vpop.xlane.xlu0 %65
    %v67 = vrot.slane %v66, 4
    %v68 = vadd.f32 %v66, %v67
    %v69 = vrot.slane %v68, 2
    %v70 = vadd.f32 %v68, %v69
    %v71 = vrot.slane %v70, 1
    %v72 = vadd.f32 %v70, %v71
    %s73 = vtos %v72
    %s74 = smul.f32 %s73, 200.0
    %v75 = vrcp.pop 512.0
    %s76 = vtos %v75
    %s77 = smul.f32 %s74, %s76
    %s78 = scalar_lea.smem [#allocation8], 0
    %79 = sst [smem:[%s78]] %s77
    // Predicated region
    $region26: #{tpu_custom_call.1} parent=1 // pred_check
      _
    $region27: #{tpu_custom_call.1} parent=1 // pred_check_branch
      %81 = sbr.rel (0) target = $region29
    $region28: #{tpu_custom_call.1} parent=1 // pred_region
      %s83 = ssub.s32 16, 16
      %84 = vsyncadd [#allocation4], %s83
      %87 = dma.smem_to_hbm [#allocation8], 16, %s3, [#allocation4]
    $region29: #{tpu_custom_call.1} parent=1 // pred_fallthru
      _
    // Predicated region
    $region30: #{tpu_custom_call.1} parent=1 // pred_check
      _
    $region31: #{tpu_custom_call.1} parent=1 // pred_check_branch
      %89 = sbr.rel (0) target = $region33
    $region32: #{tpu_custom_call.1} parent=1 // pred_region
      %90 = dma.done [#allocation4], 16
    $region33: #{tpu_custom_call.1} parent=1 // pred_fallthru
      _
    %91 = sfence
    %92 = vsyncpa [#allocation3], 1
    %93 = vsyncpa [#allocation6], 1
    %94 = vsyncpa [#allocation4], 1

</llo_original>
